<compile_context>
chip_gen: v6e
topology: v6e:2x2x1
jax: 0.10.0
libtpu: 0.0.40
codegen_flags: <defaults>
</compile_context>

<pallas_src>
import functools

import jax
import jax.numpy as jnp
import numpy as np
from jax.experimental import pallas as pl
from jax.experimental.pallas import tpu as pltpu


# ---------------------------------------------------------------------------
# Fused kernel: one grid step == `bt` images, batch+spatial on the lane axis.
# ---------------------------------------------------------------------------
def _fused_downsample_kernel(p_ref, w1_ref, b1_ref, w2_ref, b2_ref, m_ref,
                             out_ref, *, Wo, C_out):
    """Fused conv1+SiLU -> conv2+SiLU, + AvgPool(mask).

    p_ref  : (C_in*s*s, N)       conv1 im2col, N = bt*Ho*Wo, bf16
    w1_ref : (C_out+1, C_in*s*s) conv1 weights + avg-pool row (last row), bf16
    b1_ref : (C_out, 1)          f32
    w2_ref : (C_out, 9*C_out)    conv2 weights, (kh,kw)-major columns, bf16
    b2_ref : (C_out, 1)          f32
    m_ref  : (9, N)              0/1 boundary masks per 3x3 offset, f32
    out_ref: (1+C_out, N)        row 0 = skip (AvgPool mask), rows 1.. = learned
    """
    N = p_ref.shape[1]

    # conv1 (+ mask avg-pool as the extra row): one bf16 MXU matmul, f32 acc.
    acc1 = jnp.dot(w1_ref[...], p_ref[...],
                   preferred_element_type=jnp.float32)      # (C_out+1, N)
    skip = acc1[C_out:C_out + 1, :]           # exact AvgPool: no bias, no SiLU
    pre1 = acc1[:C_out, :] + b1_ref[...]
    # Exact SiLU.  exp(-x) may overflow to inf for very negative x; the exact
    # divide then yields sigmoid == 0 and finite*0 == 0, so no NaNs.
    y1 = pre1 * (1.0 / (1.0 + jnp.exp(-pre1)))               # (C_out, N) f32

    # conv2: build the 9 shifted/masked taps and run ONE K = 9*C_out matmul.
    masks = m_ref[...]                                        # (9, N), 0/1
    taps = []
    o = 0
    for dh in (-1, 0, 1):
        for dw in (-1, 0, 1):
            if dh == 0 and dw == 0:
                taps.append(y1)
            else:
                shift = (-(dh * Wo + dw)) % N                 # static lane roll
                src = pltpu.roll(y1, shift=shift, axis=1)
                taps.append(src * masks[o:o + 1, :])          # zero-pad borders
            o += 1
    tap_slab = jnp.concatenate(taps, axis=0).astype(jnp.bfloat16)  # (9*C_out, N)
    acc2 = jnp.dot(w2_ref[...], tap_slab,
                   preferred_element_type=jnp.float32)        # (C_out, N)
    pre2 = acc2 + b2_ref[...]
    y2 = pre2 * (1.0 / (1.0 + jnp.exp(-pre2)))                # exact SiLU

    # Single lane-dense, full-slab store: row 0 = skip, rows 1.. = learned.
    out_ref[...] = jnp.concatenate([skip, y2], axis=0).astype(out_ref.dtype)


# ---------------------------------------------------------------------------
# DownsampleBlock forward (mode='pool')
# ---------------------------------------------------------------------------
def downsample_block(x, params, shrink_fac=4, block_batch=None):
    """x: (B, C_in, H, W) float32 NCHW.  Returns (B, 1+C_out, H/s, W/s) f32."""
    B, C_in, H, W = x.shape
    s = shrink_fac
    assert H % s == 0 and W % s == 0
    Ho, Wo = H // s, W // s
    HW = Ho * Wo
    w1, b1, w2, b2 = params["w1"], params["b1"], params["w2"], params["b2"]
    C_out = w1.shape[0]
    K1 = C_in * s * s

    # Images per grid step (lane-axis batch packing).  Pack up to ~2048 lanes
    # per step, keep the lane block a multiple of 128, and keep the grid length
    # even when the batch allows so both v7x TensorCores stay busy.
    if block_batch is None:
        bt = 1
        for cand in range(1, B + 1):
            if B % cand != 0:
                continue
            lanes = cand * HW
            if lanes > 2048:
                continue
            if lanes % 128 != 0 and cand != B:
                continue
            if B >= 2 and (B // cand) % 2 != 0:
                continue
            bt = cand
    else:
        bt = block_batch
    if (bt * HW) % 128 != 0 and bt != B:
        bt = B                           # fall back to a full-array lane block
    assert B % bt == 0
    G = B // bt
    N = bt * HW

    # conv1 im2col (kernel==stride -> pure relayout, no duplication), batch and
    # spatial on lanes: p1[(c,kh,kw), b*HW + h*Wo + w] = x[b, c, h*s+kh, w*s+kw].
    # Built in bf16 so the relayout also halves the bytes the kernel reads.
    xr = x.astype(jnp.bfloat16).reshape(B, C_in, Ho, s, Wo, s)
    p1 = xr.transpose(1, 3, 5, 0, 2, 4).reshape(K1, B * HW)

    # conv1 weights with an extra avg-pool row: the mask is channel 0, i.e. the
    # first s*s entries of the (c,kh,kw)-flattened patch.  1/(s*s) is exact in
    # bf16 for power-of-two s.
    w1_mat = w1.reshape(C_out, K1)
    pool_row = jnp.zeros((1, K1), w1_mat.dtype).at[0, :s * s].set(1.0 / (s * s))
    w1_aug = jnp.concatenate([w1_mat, pool_row], axis=0).astype(jnp.bfloat16)
    b1_col = b1.reshape(C_out, 1).astype(jnp.float32)

    # conv2 weights flattened so ONE matmul consumes the 9-tap slab:
    # column (kh*3+kw)*C_out + c  <->  tap-slab row o*C_out + c.
    w2_flat = w2.transpose(0, 2, 3, 1).reshape(C_out, 9 * C_out).astype(jnp.bfloat16)
    b2_col = b2.reshape(C_out, 1).astype(jnp.float32)

    # Precomputed 0/1 boundary masks per 3x3 offset (hoisted out of the kernel;
    # constant index_map -> fetched once and kept resident).
    hh = jnp.arange(Ho).reshape(Ho, 1)
    ww = jnp.arange(Wo).reshape(1, Wo)
    rows = []
    for dh in (-1, 0, 1):
        for dw in (-1, 0, 1):
            valid = ((hh + dh >= 0) & (hh + dh < Ho) &
                     (ww + dw >= 0) & (ww + dw < Wo))
            rows.append(valid.reshape(1, HW))
    mask9 = jnp.tile(jnp.concatenate(rows, axis=0).astype(jnp.float32), (1, bt))

    kernel = functools.partial(_fused_downsample_kernel, Wo=Wo, C_out=C_out)

    out_flat = pl.pallas_call(
        kernel,
        out_shape=jax.ShapeDtypeStruct((1 + C_out, B * HW), jnp.float32),
        grid=(G,),
        in_specs=[
            pl.BlockSpec((K1, N), lambda g: (0, g)),
            pl.BlockSpec((C_out + 1, K1), lambda g: (0, 0)),
            pl.BlockSpec((C_out, 1), lambda g: (0, 0)),
            pl.BlockSpec((C_out, 9 * C_out), lambda g: (0, 0)),
            pl.BlockSpec((C_out, 1), lambda g: (0, 0)),
            pl.BlockSpec((9, N), lambda g: (0, 0)),
        ],
        out_specs=pl.BlockSpec((1 + C_out, N), lambda g: (0, g)),
        compiler_params=pltpu.CompilerParams(
            dimension_semantics=("parallel",)),
    )(p1, w1_aug, b1_col, w2_flat, b2_col, mask9)

    # (1+C_out, B*HW) -> (B, 1+C_out, Ho, Wo).  Tiny output relayout (~7x fewer
    # bytes than x); keeps the in-kernel store lane-dense and unmasked.
    return out_flat.reshape(1 + C_out, B, Ho, Wo).transpose(1, 0, 2, 3)


# ---------------------------------------------------------------------------
# Pure-JAX reference (correctness check, f32)
# ---------------------------------------------------------------------------
def _reference(x, params, s):
    B, _, H, W = x.shape
    mask = x[:, 0:1]
    skip = mask.reshape(B, 1, H // s, s, W // s, s).mean(axis=(3, 5))
    dn = ("NCHW", "OIHW", "NCHW")
    l1 = jax.lax.conv_general_dilated(x, params["w1"], (s, s), "VALID",
                                      dimension_numbers=dn)
    l1 = l1 + params["b1"].reshape(1, -1, 1, 1)
    l1 = l1 * jax.nn.sigmoid(l1)
    l2 = jax.lax.conv_general_dilated(l1, params["w2"], (1, 1),
                                      ((1, 1), (1, 1)), dimension_numbers=dn)
    l2 = l2 + params["b2"].reshape(1, -1, 1, 1)
    l2 = l2 * jax.nn.sigmoid(l2)
    return jnp.concatenate([skip, l2], axis=1)


# ---------------------------------------------------------------------------
if __name__ == "__main__":
    # Small but representative shapes: with shrink_fac=4 a 64x64 input gives a
    # 16x16 feature map (Ho*Wo = 256, a multiple of 128), and B=4 exercises
    # lane-axis batch packing (bt=2 images per step) with an even grid of 2.
    B, C_in, H, W = 4, 4, 64, 64
    shrink_fac = 4
    C_out = 8

    key = jax.random.PRNGKey(0)
    kx, k1, k2, k3, k4 = jax.random.split(key, 5)

    x = jax.random.normal(kx, (B, C_in, H, W), dtype=jnp.float32)

    # Deterministic synthetic parameters (PyTorch shapes: OIHW weights).
    params = {
        "w1": 0.1 * jax.random.normal(k1, (C_out, C_in, shrink_fac, shrink_fac),
                                      dtype=jnp.float32),
        "b1": 0.1 * jax.random.normal(k2, (C_out,), dtype=jnp.float32),
        "w2": 0.1 * jax.random.normal(k3, (C_out, C_out, 3, 3), dtype=jnp.float32),
        "b2": 0.1 * jax.random.normal(k4, (C_out,), dtype=jnp.float32),
    }

    fwd = jax.jit(lambda xx, pp: downsample_block(xx, pp, shrink_fac=shrink_fac))
    out = jax.block_until_ready(fwd(x, params))

    ref = jax.block_until_ready(_reference(x, params, shrink_fac))
    assert out.shape == (B, 1 + C_out, H // shrink_fac, W // shrink_fac)
    # SiLU is exact; tolerance is sized for bf16 MXU operands (f32 reference):
    # ~2^-9 relative rounding per operand over K=64/72-term accumulations.
    np.testing.assert_allclose(np.asarray(out), np.asarray(ref),
                               rtol=3e-2, atol=3e-2)

    print("KERNEL_OK")
</pallas_src>

<mosaic_0001>
module attributes {stable_mosaic.version = 11 : i64} {
  func.func @_fused_downsample_kernel(%arg0: i32, %arg1: memref<64x512xbf16, #tpu.memory_space<vmem>>, %arg2: memref<9x64xbf16, #tpu.memory_space<vmem>>, %arg3: memref<8x1xf32, #tpu.memory_space<vmem>>, %arg4: memref<8x72xbf16, #tpu.memory_space<vmem>>, %arg5: memref<8x1xf32, #tpu.memory_space<vmem>>, %arg6: memref<9x512xf32, #tpu.memory_space<vmem>>, %arg7: memref<9x512xf32, #tpu.memory_space<vmem>>) attributes {dimension_semantics = [#tpu.dimension_semantics<parallel>], iteration_bounds = array<i64: 2>, scalar_prefetch = 0 : i64, scratch_operands = 0 : i64, tpu.core_type = #tpu.core_type<tc>, window_params = [{transform_indices = @transform_0, window_bounds = array<i64: 64, 512>}, {pipeline_mode = #tpu.pipeline_mode<synchronous>, transform_indices = @transform_1, window_bounds = array<i64: 9, 64>}, {pipeline_mode = #tpu.pipeline_mode<synchronous>, transform_indices = @transform_2, window_bounds = array<i64: 8, 1>}, {pipeline_mode = #tpu.pipeline_mode<synchronous>, transform_indices = @transform_3, window_bounds = array<i64: 8, 72>}, {pipeline_mode = #tpu.pipeline_mode<synchronous>, transform_indices = @transform_4, window_bounds = array<i64: 8, 1>}, {pipeline_mode = #tpu.pipeline_mode<synchronous>, transform_indices = @transform_5, window_bounds = array<i64: 9, 512>}, {transform_indices = @transform_6, window_bounds = array<i64: 9, 512>}]} {
    %c0 = arith.constant 0 : index
    %c0_0 = arith.constant 0 : index
    %0 = vector.load %arg2[%c0, %c0_0] : memref<9x64xbf16, #tpu.memory_space<vmem>>, vector<9x64xbf16>
    %c0_1 = arith.constant 0 : index
    %c0_2 = arith.constant 0 : index
    %1 = vector.load %arg1[%c0_1, %c0_2] : memref<64x512xbf16, #tpu.memory_space<vmem>>, vector<64x512xbf16>
    %cst = arith.constant dense<0.000000e+00> : vector<9x512xf32>
    %2 = tpu.matmul %0, %1, %cst {dimension_numbers = #tpu.dot_dimension_numbers<[1], [0], [0], [1], [0, 0, 1, 1], [], []>} : vector<9x64xbf16>, vector<64x512xbf16>, vector<9x512xf32> -> vector<9x512xf32>
    %3 = vector.extract_strided_slice %2 {offsets = [8, 0], sizes = [1, 512], strides = [1, 1]} : vector<9x512xf32> to vector<1x512xf32>
    %4 = vector.extract_strided_slice %2 {offsets = [0, 0], sizes = [8, 512], strides = [1, 1]} : vector<9x512xf32> to vector<8x512xf32>
    %c0_3 = arith.constant 0 : index
    %c0_4 = arith.constant 0 : index
    %5 = vector.load %arg3[%c0_3, %c0_4] : memref<8x1xf32, #tpu.memory_space<vmem>>, vector<8x1xf32>
    %6 = vector.broadcast %5 : vector<8x1xf32> to vector<8x512xf32>
    %7 = arith.addf %4, %6 : vector<8x512xf32>
    %cst_5 = arith.constant 0.000000e+00 : f32
    %8 = vector.broadcast %cst_5 : f32 to vector<8x512xf32>
    %9 = arith.subf %8, %7 : vector<8x512xf32>
    %10 = math.exp %9 : vector<8x512xf32>
    %cst_6 = arith.constant 1.000000e+00 : f32
    %11 = vector.broadcast %cst_6 : f32 to vector<8x512xf32>
    %12 = arith.addf %11, %10 : vector<8x512xf32>
    %cst_7 = arith.constant 1.000000e+00 : f32
    %13 = vector.broadcast %cst_7 : f32 to vector<8x512xf32>
    %14 = arith.divf %13, %12 : vector<8x512xf32>
    %15 = arith.mulf %7, %14 : vector<8x512xf32>
    %c0_8 = arith.constant 0 : index
    %c0_9 = arith.constant 0 : index
    %16 = vector.load %arg6[%c0_8, %c0_9] : memref<9x512xf32, #tpu.memory_space<vmem>>, vector<9x512xf32>
    %c17_i32 = arith.constant 17 : i32
    %17 = tpu.dynamic_rotate %15 by %c17_i32 dim 1 : vector<8x512xf32>, i32 -> vector<8x512xf32>
    %18 = vector.extract_strided_slice %16 {offsets = [0, 0], sizes = [1, 512], strides = [1, 1]} : vector<9x512xf32> to vector<1x512xf32>
    %19 = vector.broadcast %18 : vector<1x512xf32> to vector<8x512xf32>
    %20 = arith.mulf %17, %19 : vector<8x512xf32>
    %c16_i32 = arith.constant 16 : i32
    %21 = tpu.dynamic_rotate %15 by %c16_i32 dim 1 : vector<8x512xf32>, i32 -> vector<8x512xf32>
    %22 = vector.extract_strided_slice %16 {offsets = [1, 0], sizes = [1, 512], strides = [1, 1]} : vector<9x512xf32> to vector<1x512xf32>
    %23 = vector.broadcast %22 : vector<1x512xf32> to vector<8x512xf32>
    %24 = arith.mulf %21, %23 : vector<8x512xf32>
    %c15_i32 = arith.constant 15 : i32
    %25 = tpu.dynamic_rotate %15 by %c15_i32 dim 1 : vector<8x512xf32>, i32 -> vector<8x512xf32>
    %26 = vector.extract_strided_slice %16 {offsets = [2, 0], sizes = [1, 512], strides = [1, 1]} : vector<9x512xf32> to vector<1x512xf32>
    %27 = vector.broadcast %26 : vector<1x512xf32> to vector<8x512xf32>
    %28 = arith.mulf %25, %27 : vector<8x512xf32>
    %c1_i32 = arith.constant 1 : i32
    %29 = tpu.dynamic_rotate %15 by %c1_i32 dim 1 : vector<8x512xf32>, i32 -> vector<8x512xf32>
    %30 = vector.extract_strided_slice %16 {offsets = [3, 0], sizes = [1, 512], strides = [1, 1]} : vector<9x512xf32> to vector<1x512xf32>
    %31 = vector.broadcast %30 : vector<1x512xf32> to vector<8x512xf32>
    %32 = arith.mulf %29, %31 : vector<8x512xf32>
    %c511_i32 = arith.constant 511 : i32
    %33 = tpu.dynamic_rotate %15 by %c511_i32 dim 1 : vector<8x512xf32>, i32 -> vector<8x512xf32>
    %34 = vector.extract_strided_slice %16 {offsets = [5, 0], sizes = [1, 512], strides = [1, 1]} : vector<9x512xf32> to vector<1x512xf32>
    %35 = vector.broadcast %34 : vector<1x512xf32> to vector<8x512xf32>
    %36 = arith.mulf %33, %35 : vector<8x512xf32>
    %c497_i32 = arith.constant 497 : i32
    %37 = tpu.dynamic_rotate %15 by %c497_i32 dim 1 : vector<8x512xf32>, i32 -> vector<8x512xf32>
    %38 = vector.extract_strided_slice %16 {offsets = [6, 0], sizes = [1, 512], strides = [1, 1]} : vector<9x512xf32> to vector<1x512xf32>
    %39 = vector.broadcast %38 : vector<1x512xf32> to vector<8x512xf32>
    %40 = arith.mulf %37, %39 : vector<8x512xf32>
    %c496_i32 = arith.constant 496 : i32
    %41 = tpu.dynamic_rotate %15 by %c496_i32 dim 1 : vector<8x512xf32>, i32 -> vector<8x512xf32>
    %42 = vector.extract_strided_slice %16 {offsets = [7, 0], sizes = [1, 512], strides = [1, 1]} : vector<9x512xf32> to vector<1x512xf32>
    %43 = vector.broadcast %42 : vector<1x512xf32> to vector<8x512xf32>
    %44 = arith.mulf %41, %43 : vector<8x512xf32>
    %c495_i32 = arith.constant 495 : i32
    %45 = tpu.dynamic_rotate %15 by %c495_i32 dim 1 : vector<8x512xf32>, i32 -> vector<8x512xf32>
    %46 = vector.extract_strided_slice %16 {offsets = [8, 0], sizes = [1, 512], strides = [1, 1]} : vector<9x512xf32> to vector<1x512xf32>
    %47 = vector.broadcast %46 : vector<1x512xf32> to vector<8x512xf32>
    %48 = arith.mulf %45, %47 : vector<8x512xf32>
    %49 = tpu.concatenate %20, %24, %28, %32, %15, %36, %40, %44, %48 in 0 : vector<8x512xf32>, vector<8x512xf32>, vector<8x512xf32>, vector<8x512xf32>, vector<8x512xf32>, vector<8x512xf32>, vector<8x512xf32>, vector<8x512xf32>, vector<8x512xf32> -> vector<72x512xf32>
    %50 = arith.truncf %49 : vector<72x512xf32> to vector<72x512xbf16>
    %c0_10 = arith.constant 0 : index
    %c0_11 = arith.constant 0 : index
    %51 = vector.load %arg4[%c0_10, %c0_11] : memref<8x72xbf16, #tpu.memory_space<vmem>>, vector<8x72xbf16>
    %cst_12 = arith.constant dense<0.000000e+00> : vector<8x512xf32>
    %52 = tpu.matmul %51, %50, %cst_12 {dimension_numbers = #tpu.dot_dimension_numbers<[1], [0], [0], [1], [0, 0, 1, 1], [], []>} : vector<8x72xbf16>, vector<72x512xbf16>, vector<8x512xf32> -> vector<8x512xf32>
    %c0_13 = arith.constant 0 : index
    %c0_14 = arith.constant 0 : index
    %53 = vector.load %arg5[%c0_13, %c0_14] : memref<8x1xf32, #tpu.memory_space<vmem>>, vector<8x1xf32>
    %54 = vector.broadcast %53 : vector<8x1xf32> to vector<8x512xf32>
    %55 = arith.addf %52, %54 : vector<8x512xf32>
    %cst_15 = arith.constant 0.000000e+00 : f32
    %56 = vector.broadcast %cst_15 : f32 to vector<8x512xf32>
    %57 = arith.subf %56, %55 : vector<8x512xf32>
    %58 = math.exp %57 : vector<8x512xf32>
    %cst_16 = arith.constant 1.000000e+00 : f32
    %59 = vector.broadcast %cst_16 : f32 to vector<8x512xf32>
    %60 = arith.addf %59, %58 : vector<8x512xf32>
    %cst_17 = arith.constant 1.000000e+00 : f32
    %61 = vector.broadcast %cst_17 : f32 to vector<8x512xf32>
    %62 = arith.divf %61, %60 : vector<8x512xf32>
    %63 = arith.mulf %55, %62 : vector<8x512xf32>
    %64 = tpu.concatenate %3, %63 in 0 : vector<1x512xf32>, vector<8x512xf32> -> vector<9x512xf32>
    %c0_18 = arith.constant 0 : index
    %c0_19 = arith.constant 0 : index
    %65 = vector.load %arg7[%c0_18, %c0_19] : memref<9x512xf32, #tpu.memory_space<vmem>>, vector<9x512xf32>
    tpu.vector_store %arg7[%c0_18, %c0_19], %64 {strides = array<i32>} : memref<9x512xf32, #tpu.memory_space<vmem>>, vector<9x512xf32>,
    return
  }
  func.func @transform_0(%arg0: i32) -> (i32, i32) {
    %c0_i32 = arith.constant 0 : i32
    %c0_i32_0 = arith.constant 0 : i32
    return %c0_i32, %arg0 : i32, i32
  }
  func.func @transform_1(%arg0: i32) -> (i32, i32) {
    %c0_i32 = arith.constant 0 : i32
    %c0_i32_0 = arith.constant 0 : i32
    %c0_i32_1 = arith.constant 0 : i32
    return %c0_i32, %c0_i32_0 : i32, i32
  }
  func.func @transform_2(%arg0: i32) -> (i32, i32) {
    %c0_i32 = arith.constant 0 : i32
    %c0_i32_0 = arith.constant 0 : i32
    %c0_i32_1 = arith.constant 0 : i32
    return %c0_i32, %c0_i32_0 : i32, i32
  }
  func.func @transform_3(%arg0: i32) -> (i32, i32) {
    %c0_i32 = arith.constant 0 : i32
    %c0_i32_0 = arith.constant 0 : i32
    %c0_i32_1 = arith.constant 0 : i32
    return %c0_i32, %c0_i32_0 : i32, i32
  }
  func.func @transform_4(%arg0: i32) -> (i32, i32) {
    %c0_i32 = arith.constant 0 : i32
    %c0_i32_0 = arith.constant 0 : i32
    %c0_i32_1 = arith.constant 0 : i32
    return %c0_i32, %c0_i32_0 : i32, i32
  }
  func.func @transform_5(%arg0: i32) -> (i32, i32) {
    %c0_i32 = arith.constant 0 : i32
    %c0_i32_0 = arith.constant 0 : i32
    %c0_i32_1 = arith.constant 0 : i32
    return %c0_i32, %c0_i32_0 : i32, i32
  }
  func.func @transform_6(%arg0: i32) -> (i32, i32) {
    %c0_i32 = arith.constant 0 : i32
    %c0_i32_0 = arith.constant 0 : i32
    return %c0_i32, %arg0 : i32, i32
  }
}

</mosaic_0001>

<llo_original>
// kernel: _lambda_.1
$region0: #{_lambda_.1}
  #allocation0 [shape = 'u32[]', space=smem, size = 0x4, offset = 0x4, fixed_abs, tag = 'smem constant byte address 0x4 - core index']
  #allocation1 [shape = 'u32[144,128]{1,0:T(1,128)}', space=vmem, size = 0x12000, scoped, tag = 'internal scratch']
  %s0 = inlined_call_operand.vmem [shape: bf16[64,1024], index: 0, kind: input, shape index: {}]
  %s1 = inlined_call_operand.vmem [shape: bf16[9,64], index: 1, kind: input, shape index: {}]
  %s2 = inlined_call_operand.vmem [shape: f32[8,1], index: 2, kind: input, shape index: {}]
  %s3 = inlined_call_operand.vmem [shape: bf16[8,72], index: 3, kind: input, shape index: {}]
  %s4 = inlined_call_operand.vmem [shape: f32[8,1], index: 4, kind: input, shape index: {}]
  %s5 = inlined_call_operand.vmem [shape: f32[9,512], index: 5, kind: input, shape index: {}]
  %s6 = inlined_call_operand.vmem [shape: f32[9,1024], index: 6, kind: output, shape index: {}]
  %s7 = sld [smem:[#allocation0]]
  $region99: #{_lambda_.1} parent=0
    _
  %s9 = ssub.s32 1, %s7
  %s10 = scalar_select 0, %s9, %s7
  $region1: #{_lambda_.1} parent=0
    #allocation2 [shape = 'u8[131072]{0}', space=vmem, size = 0x20000, scoped, tag = 'input window, operand 0']
    #allocation3 [shape = 'u8[65536]{0}', space=vmem, size = 0x10000, scoped, tag = 'output window, operand 0']
    loop: start=0, step=1, limit=4
    $region2: #{_lambda_.1} parent=1 // loop_pre_header
      _
    $region3: #{_lambda_.1} parent=1 // loop_header
      %s12 = sphi 0, %s16
      %p13 = scmp.ge.s32.totalorder %s12, 4
      %s22 = sphi 0, %s24
      %s25 = sphi 0, %s22
      %s26 = sphi 0, %s25
      %s42 = sphi 0, %s26
      %s46 = sphi 0, %s46
      %s48 = sphi 0, %s46
      %s49 = sphi 0, %s48
      %s63 = sphi 0, %s49
      %s67 = sphi 0, %s67
      %s69 = sphi 0, %s67
      %s70 = sphi 0, %s69
      %s84 = sphi 0, %s70
      %s88 = sphi 0, %s88
      %s90 = sphi 0, %s88
      %s91 = sphi 0, %s90
      %s105 = sphi 0, %s91
      %s109 = sphi 0, %s109
      %s111 = sphi 0, %s109
      %s112 = sphi 0, %s111
      %s126 = sphi 0, %s112
      %s130 = sphi 0, %s130
      %s132 = sphi 0, %s130
      %s133 = sphi 0, %s132
      %s147 = sphi 0, %s133
      %s153 = sphi 0, %s155
      %s156 = sphi 0, %s153
      %s157 = sphi 0, %s156
      %s173 = sphi 0, %s157
    $region4: #{_lambda_.1} parent=1 // loop_header_branch
      %15 = sbr.rel (%p13) target = $region8
    $region5: #{_lambda_.1} parent=1 // loop_body
      %s17 = ssub.s32 %s12, 1
      %s18 = ssub.s32 %s12, 2
      %s19 = sadd.s32 %s12, 1
      %s20 = ssub.s32 %s12, %s19
      %p21 = scmp.eq.s32.totalorder %s20, 0
      %s23 = sadd.s32 %s22, 1
      %s24 = scalar_select %p21, %s22, %s23
      %p27 = pneg %p21
      %p28 = scmp.eq.s32.totalorder %s12, 1
      %p29 = por %p27, %p28
      %p30 = scmp.ne.s32.totalorder %s22, %s25
      %p31 = scmp.eq.s32.totalorder %s12, 0
      %p32 = por %p30, %p31
      %p33 = scmp.ne.s32.totalorder %s22, %s25
      %p34 = scmp.eq.s32.totalorder %s17, 1
      %p35 = por %p33, %p34
      %p36 = scmp.ne.s32.totalorder %s25, %s26
      %p37 = scmp.eq.s32.totalorder %s17, 0
      %p38 = por %p36, %p37
      %p39 = scmp.ne.s32.totalorder %s25, %s26
      %p40 = scmp.eq.s32.totalorder %s18, 1
      %p41 = por %p39, %p40
      %p43 = scmp.ne.s32.totalorder %s26, %s42
      %p44 = scmp.eq.s32.totalorder %s18, 0
      %p45 = por %p43, %p44
      %s47 = sadd.s32 %s46, 1
      %p50 = scmp.eq.s32.totalorder %s12, 1
      %p51 = scmp.ne.s32.totalorder %s46, %s48
      %p52 = scmp.eq.s32.totalorder %s12, 0
      %p53 = por %p51, %p52
      %p54 = scmp.ne.s32.totalorder %s46, %s48
      %p55 = scmp.eq.s32.totalorder %s17, 1
      %p56 = por %p54, %p55
      %p57 = scmp.ne.s32.totalorder %s48, %s49
      %p58 = scmp.eq.s32.totalorder %s17, 0
      %p59 = por %p57, %p58
      %p60 = scmp.ne.s32.totalorder %s48, %s49
      %p61 = scmp.eq.s32.totalorder %s18, 1
      %p62 = por %p60, %p61
      %p64 = scmp.ne.s32.totalorder %s49, %s63
      %p65 = scmp.eq.s32.totalorder %s18, 0
      %p66 = por %p64, %p65
      %s68 = sadd.s32 %s67, 1
      %p71 = scmp.eq.s32.totalorder %s12, 1
      %p72 = scmp.ne.s32.totalorder %s67, %s69
      %p73 = scmp.eq.s32.totalorder %s12, 0
      %p74 = por %p72, %p73
      %p75 = scmp.ne.s32.totalorder %s67, %s69
      %p76 = scmp.eq.s32.totalorder %s17, 1
      %p77 = por %p75, %p76
      %p78 = scmp.ne.s32.totalorder %s69, %s70
      %p79 = scmp.eq.s32.totalorder %s17, 0
      %p80 = por %p78, %p79
      %p81 = scmp.ne.s32.totalorder %s69, %s70
      %p82 = scmp.eq.s32.totalorder %s18, 1
      %p83 = por %p81, %p82
      %p85 = scmp.ne.s32.totalorder %s70, %s84
      %p86 = scmp.eq.s32.totalorder %s18, 0
      %p87 = por %p85, %p86
      %s89 = sadd.s32 %s88, 1
      %p92 = scmp.eq.s32.totalorder %s12, 1
      %p93 = scmp.ne.s32.totalorder %s88, %s90
      %p94 = scmp.eq.s32.totalorder %s12, 0
      %p95 = por %p93, %p94
      %p96 = scmp.ne.s32.totalorder %s88, %s90
      %p97 = scmp.eq.s32.totalorder %s17, 1
      %p98 = por %p96, %p97
      %p99 = scmp.ne.s32.totalorder %s90, %s91
      %p100 = scmp.eq.s32.totalorder %s17, 0
      %p101 = por %p99, %p100
      %p102 = scmp.ne.s32.totalorder %s90, %s91
      %p103 = scmp.eq.s32.totalorder %s18, 1
      %p104 = por %p102, %p103
      %p106 = scmp.ne.s32.totalorder %s91, %s105
      %p107 = scmp.eq.s32.totalorder %s18, 0
      %p108 = por %p106, %p107
      %s110 = sadd.s32 %s109, 1
      %p113 = scmp.eq.s32.totalorder %s12, 1
      %p114 = scmp.ne.s32.totalorder %s109, %s111
      %p115 = scmp.eq.s32.totalorder %s12, 0
      %p116 = por %p114, %p115
      %p117 = scmp.ne.s32.totalorder %s109, %s111
      %p118 = scmp.eq.s32.totalorder %s17, 1
      %p119 = por %p117, %p118
      %p120 = scmp.ne.s32.totalorder %s111, %s112
      %p121 = scmp.eq.s32.totalorder %s17, 0
      %p122 = por %p120, %p121
      %p123 = scmp.ne.s32.totalorder %s111, %s112
      %p124 = scmp.eq.s32.totalorder %s18, 1
      %p125 = por %p123, %p124
      %p127 = scmp.ne.s32.totalorder %s112, %s126
      %p128 = scmp.eq.s32.totalorder %s18, 0
      %p129 = por %p127, %p128
      %s131 = sadd.s32 %s130, 1
      %p134 = scmp.eq.s32.totalorder %s12, 1
      %p135 = scmp.ne.s32.totalorder %s130, %s132
      %p136 = scmp.eq.s32.totalorder %s12, 0
      %p137 = por %p135, %p136
      %p138 = scmp.ne.s32.totalorder %s130, %s132
      %p139 = scmp.eq.s32.totalorder %s17, 1
      %p140 = por %p138, %p139
      %p141 = scmp.ne.s32.totalorder %s132, %s133
      %p142 = scmp.eq.s32.totalorder %s17, 0
      %p143 = por %p141, %p142
      %p144 = scmp.ne.s32.totalorder %s132, %s133
      %p145 = scmp.eq.s32.totalorder %s18, 1
      %p146 = por %p144, %p145
      %p148 = scmp.ne.s32.totalorder %s133, %s147
      %p149 = scmp.eq.s32.totalorder %s18, 0
      %p150 = por %p148, %p149
      %s151 = ssub.s32 %s12, %s19
      %p152 = scmp.eq.s32.totalorder %s151, 0
      %s154 = sadd.s32 %s153, 1
      %s155 = scalar_select %p152, %s153, %s154
      %p158 = pneg %p152
      %p159 = scmp.eq.s32.totalorder %s12, 1
      %p160 = por %p158, %p159
      %p161 = scmp.ne.s32.totalorder %s153, %s156
      %p162 = scmp.eq.s32.totalorder %s12, 0
      %p163 = por %p161, %p162
      %p164 = scmp.ne.s32.totalorder %s153, %s156
      %p165 = scmp.eq.s32.totalorder %s17, 1
      %p166 = por %p164, %p165
      %p167 = scmp.ne.s32.totalorder %s156, %s157
      %p168 = scmp.eq.s32.totalorder %s17, 0
      %p169 = por %p167, %p168
      %p170 = scmp.ne.s32.totalorder %s156, %s157
      %p171 = scmp.eq.s32.totalorder %s18, 1
      %p172 = por %p170, %p171
      %p174 = scmp.ne.s32.totalorder %s157, %s173
      %p175 = scmp.eq.s32.totalorder %s18, 0
      %p176 = por %p174, %p175
      %p177 = scmp.le.s32.totalorder 1, %s12
      %p178 = scmp.lt.s32.totalorder %s12, 3
      %p179 = pnand %p177, %p178
      %p180 = pneg %p179
      // Predicated region
      $region9: #{_lambda_.1} parent=5 // pred_check
        _
      $region10: #{_lambda_.1} parent=5 // pred_check_branch
        %182 = sbr.rel (%p179) target = $region12
      $region11: #{_lambda_.1} parent=5 // pred_region
        %s183 = ssub.s32 %s12, 1
        // Predicated region
        $region13: #{_lambda_.1} parent=11 // pred_check
          %p184 = pneg %p59
        $region14: #{_lambda_.1} parent=11 // pred_check_branch
          %186 = sbr.rel (%p184) target = $region16
        $region15: #{_lambda_.1} parent=11 // pred_region
          _
        $region16: #{_lambda_.1} parent=11 // pred_fallthru
          _
        // Predicated region
        $region17: #{_lambda_.1} parent=11 // pred_check
          %p187 = pneg %p80
        $region18: #{_lambda_.1} parent=11 // pred_check_branch
          %189 = sbr.rel (%p187) target = $region20
        $region19: #{_lambda_.1} parent=11 // pred_region
          _
        $region20: #{_lambda_.1} parent=11 // pred_fallthru
          _
        // Predicated region
        $region21: #{_lambda_.1} parent=11 // pred_check
          %p190 = pneg %p101
        $region22: #{_lambda_.1} parent=11 // pred_check_branch
          %192 = sbr.rel (%p190) target = $region24
        $region23: #{_lambda_.1} parent=11 // pred_region
          _
        $region24: #{_lambda_.1} parent=11 // pred_fallthru
          _
        // Predicated region
        $region25: #{_lambda_.1} parent=11 // pred_check
          %p193 = pneg %p122
        $region26: #{_lambda_.1} parent=11 // pred_check_branch
          %195 = sbr.rel (%p193) target = $region28
        $region27: #{_lambda_.1} parent=11 // pred_region
          _
        $region28: #{_lambda_.1} parent=11 // pred_fallthru
          _
        // Predicated region
        $region29: #{_lambda_.1} parent=11 // pred_check
          %p196 = pneg %p143
        $region30: #{_lambda_.1} parent=11 // pred_check_branch
          %198 = sbr.rel (%p196) target = $region32
        $region31: #{_lambda_.1} parent=11 // pred_region
          _
        $region32: #{_lambda_.1} parent=11 // pred_fallthru
          _
      $region12: #{_lambda_.1} parent=5 // pred_fallthru
        _
      %p199 = scmp.lt.s32.totalorder %s12, 2
      // Predicated region
      $region33: #{_lambda_.1} parent=5 // pred_check
        %p200 = pneg %p199
      $region34: #{_lambda_.1} parent=5 // pred_check_branch
        %202 = sbr.rel (%p200) target = $region36
      $region35: #{_lambda_.1} parent=5 // pred_region
        // Predicated region
        $region37: #{_lambda_.1} parent=35 // pred_check
          %p203 = pneg %p32
        $region38: #{_lambda_.1} parent=35 // pred_check_branch
          %205 = sbr.rel (%p203) target = $region40
        $region39: #{_lambda_.1} parent=35 // pred_region
          %s206 = sand.u32 %s22, 1
          %s207 = sand.u32 %s22, 1
          %s208 = smul.addr %s207, 128
          %s209 = scalar_lea.vmem [#allocation2], %s208
          %s210 = smul.u32 4, %s12
          %s211 = smul.addr %s210, 4
          %s212 = scalar_lea.vmem %s0, %s211
          // Predicated region
          $region41: #{_lambda_.1} parent=39 // pred_check
            _
          $region42: #{_lambda_.1} parent=39 // pred_check_branch
            %214 = sbr.rel (0) target = $region44
          $region43: #{_lambda_.1} parent=39 // pred_region
            // Predicated region
            $region45: #{_lambda_.1} parent=43 // pred_check
              _
            $region46: #{_lambda_.1} parent=43 // pred_check_branch
              %216 = sbr.rel (0) target = $region48
            $region47: #{_lambda_.1} parent=43 // pred_region
              loop: start=0, step=1, limit=1
              $region49: #{_lambda_.1} parent=47 // loop_pre_header
                _
              $region50: #{_lambda_.1} parent=47 // loop_header
                %s218 = sphi 0, %s222
                %p219 = scmp.ge.s32.totalorder %s218, 1
                %s223 = sphi %s212, %s212
                %s224 = sphi %s209, %s209
              $region51: #{_lambda_.1} parent=47 // loop_header_branch
                %221 = sbr.rel (%p219) target = $region55
              $region52: #{_lambda_.1} parent=47 // loop_body
                %v225 = vld [vmem:[%s223] sm:$0xff]
                %226 = vst [vmem:[%s224] sm:$0xff] %v225
                %v227 = vld [vmem:[%s223 + $0x8] sm:$0xff]
                %228 = vst [vmem:[%s224 + $0x8] sm:$0xff] %v227
                %v229 = vld [vmem:[%s223 + $0x20] sm:$0xff]
                %230 = vst [vmem:[%s224 + $0x10] sm:$0xff] %v229
                %v231 = vld [vmem:[%s223 + $0x28] sm:$0xff]
                %232 = vst [vmem:[%s224 + $0x18] sm:$0xff] %v231
                %v233 = vld [vmem:[%s223 + $0x40] sm:$0xff]
                %234 = vst [vmem:[%s224 + $0x20] sm:$0xff] %v233
                %v235 = vld [vmem:[%s223 + $0x48] sm:$0xff]
                %236 = vst [vmem:[%s224 + $0x28] sm:$0xff] %v235
                %v237 = vld [vmem:[%s223 + $0x60] sm:$0xff]
                %238 = vst [vmem:[%s224 + $0x30] sm:$0xff] %v237
                %v239 = vld [vmem:[%s223 + $0x68] sm:$0xff]
                %240 = vst [vmem:[%s224 + $0x38] sm:$0xff] %v239
                %v241 = vld [vmem:[%s223 + $0x80] sm:$0xff]
                %242 = vst [vmem:[%s224 + $0x40] sm:$0xff] %v241
                %v243 = vld [vmem:[%s223 + $0x88] sm:$0xff]
                %244 = vst [vmem:[%s224 + $0x48] sm:$0xff] %v243
                %v245 = vld [vmem:[%s223 + $0xa0] sm:$0xff]
                %246 = vst [vmem:[%s224 + $0x50] sm:$0xff] %v245
                %v247 = vld [vmem:[%s223 + $0xa8] sm:$0xff]
                %248 = vst [vmem:[%s224 + $0x58] sm:$0xff] %v247
                %v249 = vld [vmem:[%s223 + $0xc0] sm:$0xff]
                %250 = vst [vmem:[%s224 + $0x60] sm:$0xff] %v249
                %v251 = vld [vmem:[%s223 + $0xc8] sm:$0xff]
                %252 = vst [vmem:[%s224 + $0x68] sm:$0xff] %v251
                %v253 = vld [vmem:[%s223 + $0xe0] sm:$0xff]
                %254 = vst [vmem:[%s224 + $0x70] sm:$0xff] %v253
                %v255 = vld [vmem:[%s223 + $0xe8] sm:$0xff]
                %256 = vst [vmem:[%s224 + $0x78] sm:$0xff] %v255
              $region53: #{_lambda_.1} parent=47 // loop_footer
                %s222 = sadd.s32 1, %s218
              $region54: #{_lambda_.1} parent=47 // loop_footer_branch
                %217 = sbr.rel target = $region50
              $region55: #{_lambda_.1} parent=47 // loop_exit
                _
            $region48: #{_lambda_.1} parent=43 // pred_fallthru
              _
            // Predicated region
            $region56: #{_lambda_.1} parent=43 // pred_check
              _
            $region57: #{_lambda_.1} parent=43 // pred_check_branch
              %258 = sbr.rel target = $region59
            $region58: #{_lambda_.1} parent=43 // pred_region
              _
            $region59: #{_lambda_.1} parent=43 // pred_fallthru
              _
          $region44: #{_lambda_.1} parent=39 // pred_fallthru
            _
          %259 = vnop
        $region40: #{_lambda_.1} parent=35 // pred_fallthru
          _
      $region36: #{_lambda_.1} parent=5 // pred_fallthru
        _
      %p260 = scmp.le.s32.totalorder 1, %s12
      %p261 = scmp.lt.s32.totalorder %s12, 3
      %p262 = pnand %p260, %p261
      %p263 = pneg %p262
      // Predicated region
      $region60: #{_lambda_.1} parent=5 // pred_check
        _
      $region61: #{_lambda_.1} parent=5 // pred_check_branch
        %265 = sbr.rel (%p262) target = $region63
      $region62: #{_lambda_.1} parent=5 // pred_region
        %s266 = ssub.s32 %s12, 1
        %s267 = sand.u32 %s25, 1
        %s268 = sand.u32 %s25, 1
        %s269 = smul.addr %s268, 128
        %s270 = scalar_lea.vmem [#allocation2], %s269
        // Predicated region
        $region64: #{_lambda_.1} parent=62 // pred_check
          %p271 = pneg %p38
        $region65: #{_lambda_.1} parent=62 // pred_check_branch
          %273 = sbr.rel (%p271) target = $region67
        $region66: #{_lambda_.1} parent=62 // pred_region
          _
        $region67: #{_lambda_.1} parent=62 // pred_fallthru
          _
        %s274 = sand.u32 %s25, 1
        %s275 = sand.u32 %s25, 1
        %s276 = smul.addr %s275, 128
        %s277 = scalar_lea.vmem [#allocation2], %s276
        %p278 = pneg %p38
        %p279 = pneg %p35
        %p280 = pneg %p59
        %p281 = pneg %p56
        %p282 = pneg %p80
        %p283 = pneg %p77
        %p284 = pneg %p101
        %p285 = pneg %p98
        %p286 = pneg %p122
        %p287 = pneg %p119
        %p288 = pneg %p143
        %p289 = pneg %p140
        %p290 = pneg %p169
        %p291 = pneg %p166
        %s292 = sand.u32 %s156, 1
        %s293 = sand.u32 %s156, 1
        %s294 = smul.addr %s293, 64
        %s295 = scalar_lea.vmem [#allocation3], %s294
        %s296 = smul.u32 4, %s17
        %s297 = smul.u32 4, %s17
        %v299 = vld [vmem:[%s1] sm:$0xf]
        %v300 = vld [vmem:[%s1 + $0x4] sm:$0x1]
        %v301 = vld [vmem:[%s270] sm:$0xff]
        %v302 = vld [vmem:[%s270 + $0x8] sm:$0xff]
        %v303 = vld [vmem:[%s270 + $0x10] sm:$0xff]
        %v304 = vld [vmem:[%s270 + $0x18] sm:$0xff]
        %v305 = vld [vmem:[%s270 + $0x20] sm:$0xff]
        %v306 = vld [vmem:[%s270 + $0x28] sm:$0xff]
        %v307 = vld [vmem:[%s270 + $0x30] sm:$0xff]
        %v308 = vld [vmem:[%s270 + $0x38] sm:$0xff]
        %v309 = vld [vmem:[%s270 + $0x40] sm:$0xff]
        %v310 = vld [vmem:[%s270 + $0x48] sm:$0xff]
        %v311 = vld [vmem:[%s270 + $0x50] sm:$0xff]
        %v312 = vld [vmem:[%s270 + $0x58] sm:$0xff]
        %v313 = vld [vmem:[%s270 + $0x60] sm:$0xff]
        %v314 = vld [vmem:[%s270 + $0x68] sm:$0xff]
        %v315 = vld [vmem:[%s270 + $0x70] sm:$0xff]
        %v316 = vld [vmem:[%s270 + $0x78] sm:$0xff]
        %v319 = vunpack.c.l.b16 %v299
        %v320 = vunpack.c.l.b16 %v300
        %v321 = vpack.c.b16 %v320, %v319
        %v338 = vunpack.c.l.b16 %v301
        %v339 = vunpack.c.h.b16 %v301
        %v340 = vunpack.c.l.b16 %v302
        %v341 = vunpack.c.h.b16 %v302
        %v342 = vunpack.c.l.b16 %v303
        %v343 = vunpack.c.h.b16 %v303
        %v344 = vunpack.c.l.b16 %v304
        %v345 = vunpack.c.h.b16 %v304
        %v346 = vunpack.c.l.b16 %v305
        %v347 = vunpack.c.h.b16 %v305
        %v348 = vunpack.c.l.b16 %v306
        %v349 = vunpack.c.h.b16 %v306
        %v350 = vunpack.c.l.b16 %v307
        %v351 = vunpack.c.h.b16 %v307
        %v352 = vunpack.c.l.b16 %v308
        %v353 = vunpack.c.h.b16 %v308
        %v354 = vunpack.c.l.b16 %v309
        %v355 = vunpack.c.h.b16 %v309
        %v356 = vunpack.c.l.b16 %v310
        %v357 = vunpack.c.h.b16 %v310
        %v358 = vunpack.c.l.b16 %v311
        %v359 = vunpack.c.h.b16 %v311
        %v360 = vunpack.c.l.b16 %v312
        %v361 = vunpack.c.h.b16 %v312
        %v362 = vunpack.c.l.b16 %v313
        %v363 = vunpack.c.h.b16 %v313
        %v364 = vunpack.c.l.b16 %v314
        %v365 = vunpack.c.h.b16 %v314
        %v366 = vunpack.c.l.b16 %v315
        %v367 = vunpack.c.h.b16 %v315
        %v368 = vunpack.c.l.b16 %v316
        %v369 = vunpack.c.h.b16 %v316
        %v370 = vpack.c.b16 %v342, %v338
        %v371 = vpack.c.b16 %v343, %v339
        %v372 = vpack.c.b16 %v344, %v340
        %v373 = vpack.c.b16 %v345, %v341
        %v374 = vpack.c.b16 %v350, %v346
        %v375 = vpack.c.b16 %v351, %v347
        %v376 = vpack.c.b16 %v352, %v348
        %v377 = vpack.c.b16 %v353, %v349
        %v378 = vpack.c.b16 %v358, %v354
        %v379 = vpack.c.b16 %v359, %v355
        %v380 = vpack.c.b16 %v360, %v356
        %v381 = vpack.c.b16 %v361, %v357
        %v382 = vpack.c.b16 %v366, %v362
        %v383 = vpack.c.b16 %v367, %v363
        %v384 = vpack.c.b16 %v368, %v364
        %v385 = vpack.c.b16 %v369, %v365
        %vm402 = vcmask 523264
        %v404 = vsel %vm402, %v321, 0
        %406 = vmatprep.subr.bf16.mxu0 0
        %407 = vmatpush1.bf16.msra.mxu0 0
        %408 = vmatprep.subr.bf16.mxu0 0
        %409 = vmatpush1.bf16.msra.mxu0 0
        %410 = vmatprep.subr.bf16.mxu0 0
        %411 = vmatpush1.bf16.msra.mxu0 0
        %412 = vmatprep.subr.bf16.mxu0 0
        %413 = vmatpush1.bf16.msra.mxu0 0
        %414 = vmatprep.subr.bf16.mxu0 %v383
        %415 = vmatpush1.bf16.msra.mxu0 %v382
        %416 = vmatprep.subr.bf16.mxu0 %v379
        %417 = vmatpush1.bf16.msra.mxu0 %v378
        %418 = vmatprep.subr.bf16.mxu0 %v375
        %419 = vmatpush1.bf16.msra.mxu0 %v374
        %420 = vmatprep.subr.bf16.mxu0 %v371
        %421 = vmatpush1.bf16.msra.mxu0 %v370
        %422 = vmatprep.subr.bf16.mxu0 0
        %423 = vmatpush2.bf16.msra.mxu0 0
        %424 = vmatprep.subr.bf16.mxu0 0
        %425 = vmatpush2.bf16.msra.mxu0 0
        %426 = vmatprep.subr.bf16.mxu0 0
        %427 = vmatpush2.bf16.msra.mxu0 0
        %428 = vmatprep.subr.bf16.mxu0 0
        %429 = vmatpush2.bf16.msra.mxu0 0
        %430 = vmatprep.subr.bf16.mxu0 0
        %431 = vmatpush2.bf16.msra.mxu0 0
        %432 = vmatprep.subr.bf16.mxu0 0
        %433 = vmatpush2.bf16.msra.mxu0 0
        %434 = vmatprep.subr.bf16.mxu0 0
        %435 = vmatpush2.bf16.msra.mxu0 0
        %436 = vmatprep.subr.bf16.mxu0 0
        %437 = vmatpush2.bf16.msra.mxu0 0
        %438 = vmatprep.mubr.bf16.mxu0 0
        %439 = vmatmul.mubr.bf16.gmra.mxu0 %v404
        %v440 = vpop.f32.mrf.mxu0
        %v441 = vadd.f32 0.0, %v440
        %v442 = vpop.f32.mrf.mxu0
        %v443 = vadd.f32 0.0, %v442
        %v444 = vpop.f32.mrf.mxu0
        %v445 = vadd.f32 0.0, %v444
        %v446 = vpop.f32.mrf.mxu0
        %v447 = vadd.f32 0.0, %v446
        %448 = vdwg.mxu0
        %449 = vmatprep.subr.bf16.mxu0 0
        %450 = vmatpush1.bf16.msra.mxu0 0
        %451 = vmatprep.subr.bf16.mxu0 0
        %452 = vmatpush1.bf16.msra.mxu0 0
        %453 = vmatprep.subr.bf16.mxu0 0
        %454 = vmatpush1.bf16.msra.mxu0 0
        %455 = vmatprep.subr.bf16.mxu0 0
        %456 = vmatpush1.bf16.msra.mxu0 0
        %457 = vmatprep.subr.bf16.mxu0 %v385
        %458 = vmatpush1.bf16.msra.mxu0 %v384
        %459 = vmatprep.subr.bf16.mxu0 %v381
        %460 = vmatpush1.bf16.msra.mxu0 %v380
        %461 = vmatprep.subr.bf16.mxu0 %v377
        %462 = vmatpush1.bf16.msra.mxu0 %v376
        %463 = vmatprep.subr.bf16.mxu0 %v373
        %464 = vmatpush1.bf16.msra.mxu0 %v372
        %465 = vmatprep.subr.bf16.mxu0 0
        %466 = vmatpush2.bf16.msra.mxu0 0
        %467 = vmatprep.subr.bf16.mxu0 0
        %468 = vmatpush2.bf16.msra.mxu0 0
        %469 = vmatprep.subr.bf16.mxu0 0
        %470 = vmatpush2.bf16.msra.mxu0 0
        %471 = vmatprep.subr.bf16.mxu0 0
        %472 = vmatpush2.bf16.msra.mxu0 0
        %473 = vmatprep.subr.bf16.mxu0 0
        %474 = vmatpush2.bf16.msra.mxu0 0
        %475 = vmatprep.subr.bf16.mxu0 0
        %476 = vmatpush2.bf16.msra.mxu0 0
        %477 = vmatprep.subr.bf16.mxu0 0
        %478 = vmatpush2.bf16.msra.mxu0 0
        %479 = vmatprep.subr.bf16.mxu0 0
        %480 = vmatpush2.bf16.msra.mxu0 0
        %481 = vmatprep.mubr.bf16.mxu0 0
        %482 = vmatmul.mubr.bf16.gmra.mxu0 %v404
        %v483 = vpop.f32.mrf.mxu0
        %v484 = vadd.f32 0.0, %v483
        %v485 = vpop.f32.mrf.mxu0
        %v486 = vadd.f32 0.0, %v485
        %v487 = vpop.f32.mrf.mxu0
        %v488 = vadd.f32 0.0, %v487
        %v489 = vpop.f32.mrf.mxu0
        %v490 = vadd.f32 0.0, %v489
        %491 = vdwg.mxu0
        %v492 = vld [vmem:[%s2] sm:$0xff]
        %494 = vset.pattern.permute.xlu0 0
        %495 = vperm.xlu0 %494, %v492
        %v496 = vpop.permute.xlu0 %495
        %v498 = vadd.f32 %v441, %v496
        %v499 = vadd.f32 %v443, %v496
        %v500 = vadd.f32 %v484, %v496
        %v501 = vadd.f32 %v486, %v496
        %v502 = vsub.f32 0.0, %v498
        %v503 = vsub.f32 0.0, %v499
        %v504 = vsub.f32 0.0, %v500
        %v505 = vsub.f32 0.0, %v501
        %v506 = vmul.f32 %v502, 1.442695
        %v507 = vpow.pop %v506
        %v508 = vmul.f32 %v503, 1.442695
        %v509 = vpow.pop %v508
        %v510 = vmul.f32 %v504, 1.442695
        %v511 = vpow.pop %v510
        %v512 = vmul.f32 %v505, 1.442695
        %v513 = vpow.pop %v512
        %v514 = vadd.f32 %v507, 1.0
        %v515 = vadd.f32 %v509, 1.0
        %v516 = vadd.f32 %v511, 1.0
        %v517 = vadd.f32 %v513, 1.0
        %v518 = vrcp.pop %v514
        %v519 = vmul.f32 1.0, %v518
        %v520 = vrcp.pop %v515
        %v521 = vmul.f32 1.0, %v520
        %v522 = vrcp.pop %v516
        %v523 = vmul.f32 1.0, %v522
        %v524 = vrcp.pop %v517
        %v525 = vmul.f32 1.0, %v524
        %v526 = vmul.f32 %v498, %v519
        %v527 = vmul.f32 %v499, %v521
        %v528 = vmul.f32 %v500, %v523
        %v529 = vmul.f32 %v501, %v525
        %v530 = vld [vmem:[%s5] sm:$0xff]
        %v531 = vld [vmem:[%s5 + $0x8] sm:$0xff]
        %v532 = vld [vmem:[%s5 + $0x10] sm:$0xff]
        %v533 = vld [vmem:[%s5 + $0x18] sm:$0xff]
        %v534 = vld [vmem:[%s5 + $0x20] sm:$0x1]
        %v535 = vld [vmem:[%s5 + $0x28] sm:$0x1]
        %v536 = vld [vmem:[%s5 + $0x30] sm:$0x1]
        %v537 = vld [vmem:[%s5 + $0x38] sm:$0x1]
        %538 = vrot.lane.b32.xlu0 %v526, 17
        %v539 = vpop.permute.xlu0 %538
        %540 = vrot.lane.b32.xlu0 %v527, 17
        %v541 = vpop.permute.xlu0 %540
        %542 = vrot.lane.b32.xlu0 %v528, 17
        %v543 = vpop.permute.xlu0 %542
        %544 = vrot.lane.b32.xlu0 %v529, 17
        %v545 = vpop.permute.xlu0 %544
        %v546 = vlaneseq
        %v547 = vand.u32 %v546, 127
        %vm548 = vcmp.lt.s32.totalorder %v547, 17
        %v549 = vsel %vm548, %v543, %v545
        %v550 = vsel %vm548, %v541, %v543
        %v551 = vsel %vm548, %v539, %v541
        %v552 = vsel %vm548, %v545, %v539
        %v553 = vlaneseq
        %v554 = vshrl.u32 %v553, 7
        %v555 = vsub.s32 0, %v554
        %v556 = vrot.slane %v530, %v555
        %v557 = vlaneseq
        %v558 = vshrl.u32 %v557, 7
        %v559 = vsub.s32 0, %v558
        %v560 = vrot.slane %v531, %v559
        %v561 = vlaneseq
        %v562 = vshrl.u32 %v561, 7
        %v563 = vsub.s32 0, %v562
        %v564 = vrot.slane %v532, %v563
        %v565 = vlaneseq
        %v566 = vshrl.u32 %v565, 7
        %v567 = vsub.s32 0, %v566
        %v568 = vrot.slane %v533, %v567
        %v569 = vmul.f32 %v552, %v556
        %v570 = vmul.f32 %v551, %v560
        %v571 = vmul.f32 %v550, %v564
        %v572 = vmul.f32 %v549, %v568
        %573 = vrot.lane.b32.xlu0 %v526, 16
        %v574 = vpop.permute.xlu0 %573
        %575 = vrot.lane.b32.xlu0 %v527, 16
        %v576 = vpop.permute.xlu0 %575
        %577 = vrot.lane.b32.xlu0 %v528, 16
        %v578 = vpop.permute.xlu0 %577
        %579 = vrot.lane.b32.xlu0 %v529, 16
        %v580 = vpop.permute.xlu0 %579
        %vm581 = vcmp.lt.s32.totalorder %v547, 16
        %v582 = vsel %vm581, %v578, %v580
        %v583 = vsel %vm581, %v576, %v578
        %v584 = vsel %vm581, %v574, %v576
        %v585 = vsel %vm581, %v580, %v574
        %v586 = vlaneseq
        %v587 = vshrl.u32 %v586, 7
        %v588 = vsub.s32 1, %v587
        %v589 = vrot.slane %v530, %v588
        %v590 = vlaneseq
        %v591 = vshrl.u32 %v590, 7
        %v592 = vsub.s32 1, %v591
        %v593 = vrot.slane %v531, %v592
        %v594 = vlaneseq
        %v595 = vshrl.u32 %v594, 7
        %v596 = vsub.s32 1, %v595
        %v597 = vrot.slane %v532, %v596
        %v598 = vlaneseq
        %v599 = vshrl.u32 %v598, 7
        %v600 = vsub.s32 1, %v599
        %v601 = vrot.slane %v533, %v600
        %v602 = vmul.f32 %v585, %v589
        %v603 = vmul.f32 %v584, %v593
        %v604 = vmul.f32 %v583, %v597
        %v605 = vmul.f32 %v582, %v601
        %606 = vrot.lane.b32.xlu0 %v526, 15
        %v607 = vpop.permute.xlu0 %606
        %608 = vrot.lane.b32.xlu0 %v527, 15
        %v609 = vpop.permute.xlu0 %608
        %610 = vrot.lane.b32.xlu0 %v528, 15
        %v611 = vpop.permute.xlu0 %610
        %612 = vrot.lane.b32.xlu0 %v529, 15
        %v613 = vpop.permute.xlu0 %612
        %vm614 = vcmp.lt.s32.totalorder %v547, 15
        %v615 = vsel %vm614, %v611, %v613
        %v616 = vsel %vm614, %v609, %v611
        %v617 = vsel %vm614, %v607, %v609
        %v618 = vsel %vm614, %v613, %v607
        %v619 = vlaneseq
        %v620 = vshrl.u32 %v619, 7
        %v621 = vsub.s32 2, %v620
        %v622 = vrot.slane %v530, %v621
        %v623 = vlaneseq
        %v624 = vshrl.u32 %v623, 7
        %v625 = vsub.s32 2, %v624
        %v626 = vrot.slane %v531, %v625
        %v627 = vlaneseq
        %v628 = vshrl.u32 %v627, 7
        %v629 = vsub.s32 2, %v628
        %v630 = vrot.slane %v532, %v629
        %v631 = vlaneseq
        %v632 = vshrl.u32 %v631, 7
        %v633 = vsub.s32 2, %v632
        %v634 = vrot.slane %v533, %v633
        %v635 = vmul.f32 %v618, %v622
        %v636 = vmul.f32 %v617, %v626
        %v637 = vmul.f32 %v616, %v630
        %v638 = vmul.f32 %v615, %v634
        %639 = vrot.lane.b32.xlu0 %v526, 1
        %v640 = vpop.permute.xlu0 %639
        %641 = vrot.lane.b32.xlu0 %v527, 1
        %v642 = vpop.permute.xlu0 %641
        %643 = vrot.lane.b32.xlu0 %v528, 1
        %v644 = vpop.permute.xlu0 %643
        %645 = vrot.lane.b32.xlu0 %v529, 1
        %v646 = vpop.permute.xlu0 %645
        %vm647 = vcmp.lt.s32.totalorder %v547, 1
        %v648 = vsel %vm647, %v644, %v646
        %v649 = vsel %vm647, %v642, %v644
        %v650 = vsel %vm647, %v640, %v642
        %v651 = vsel %vm647, %v646, %v640
        %v652 = vlaneseq
        %v653 = vshrl.u32 %v652, 7
        %v654 = vsub.s32 3, %v653
        %v655 = vrot.slane %v530, %v654
        %v656 = vlaneseq
        %v657 = vshrl.u32 %v656, 7
        %v658 = vsub.s32 3, %v657
        %v659 = vrot.slane %v531, %v658
        %v660 = vlaneseq
        %v661 = vshrl.u32 %v660, 7
        %v662 = vsub.s32 3, %v661
        %v663 = vrot.slane %v532, %v662
        %v664 = vlaneseq
        %v665 = vshrl.u32 %v664, 7
        %v666 = vsub.s32 3, %v665
        %v667 = vrot.slane %v533, %v666
        %v668 = vmul.f32 %v651, %v655
        %v669 = vmul.f32 %v650, %v659
        %v670 = vmul.f32 %v649, %v663
        %v671 = vmul.f32 %v648, %v667
        %672 = vrot.lane.b32.xlu0 %v526, 127
        %v673 = vpop.permute.xlu0 %672
        %674 = vrot.lane.b32.xlu0 %v527, 127
        %v675 = vpop.permute.xlu0 %674
        %676 = vrot.lane.b32.xlu0 %v528, 127
        %v677 = vpop.permute.xlu0 %676
        %678 = vrot.lane.b32.xlu0 %v529, 127
        %v679 = vpop.permute.xlu0 %678
        %vm680 = vcmp.lt.s32.totalorder %v547, 127
        %v681 = vsel %vm680, %v677, %v679
        %v682 = vsel %vm680, %v675, %v677
        %v683 = vsel %vm680, %v673, %v675
        %v684 = vsel %vm680, %v679, %v673
        %v685 = vlaneseq
        %v686 = vshrl.u32 %v685, 7
        %v687 = vsub.s32 5, %v686
        %v688 = vrot.slane %v530, %v687
        %v689 = vlaneseq
        %v690 = vshrl.u32 %v689, 7
        %v691 = vsub.s32 5, %v690
        %v692 = vrot.slane %v531, %v691
        %v693 = vlaneseq
        %v694 = vshrl.u32 %v693, 7
        %v695 = vsub.s32 5, %v694
        %v696 = vrot.slane %v532, %v695
        %v697 = vlaneseq
        %v698 = vshrl.u32 %v697, 7
        %v699 = vsub.s32 5, %v698
        %v700 = vrot.slane %v533, %v699
        %v701 = vmul.f32 %v683, %v688
        %v702 = vmul.f32 %v682, %v692
        %v703 = vmul.f32 %v681, %v696
        %v704 = vmul.f32 %v684, %v700
        %705 = vrot.lane.b32.xlu0 %v526, 113
        %v706 = vpop.permute.xlu0 %705
        %707 = vrot.lane.b32.xlu0 %v527, 113
        %v708 = vpop.permute.xlu0 %707
        %709 = vrot.lane.b32.xlu0 %v528, 113
        %v710 = vpop.permute.xlu0 %709
        %711 = vrot.lane.b32.xlu0 %v529, 113
        %v712 = vpop.permute.xlu0 %711
        %vm713 = vcmp.lt.s32.totalorder %v547, 113
        %v714 = vsel %vm713, %v710, %v712
        %v715 = vsel %vm713, %v708, %v710
        %v716 = vsel %vm713, %v706, %v708
        %v717 = vsel %vm713, %v712, %v706
        %v718 = vlaneseq
        %v719 = vshrl.u32 %v718, 7
        %v720 = vsub.s32 6, %v719
        %v721 = vrot.slane %v530, %v720
        %v722 = vlaneseq
        %v723 = vshrl.u32 %v722, 7
        %v724 = vsub.s32 6, %v723
        %v725 = vrot.slane %v531, %v724
        %v726 = vlaneseq
        %v727 = vshrl.u32 %v726, 7
        %v728 = vsub.s32 6, %v727
        %v729 = vrot.slane %v532, %v728
        %v730 = vlaneseq
        %v731 = vshrl.u32 %v730, 7
        %v732 = vsub.s32 6, %v731
        %v733 = vrot.slane %v533, %v732
        %v734 = vmul.f32 %v716, %v721
        %v735 = vmul.f32 %v715, %v725
        %v736 = vmul.f32 %v714, %v729
        %v737 = vmul.f32 %v717, %v733
        %738 = vrot.lane.b32.xlu0 %v526, 112
        %v739 = vpop.permute.xlu0 %738
        %740 = vrot.lane.b32.xlu0 %v527, 112
        %v741 = vpop.permute.xlu0 %740
        %742 = vrot.lane.b32.xlu0 %v528, 112
        %v743 = vpop.permute.xlu0 %742
        %744 = vrot.lane.b32.xlu0 %v529, 112
        %v745 = vpop.permute.xlu0 %744
        %vm746 = vcmp.lt.s32.totalorder %v547, 112
        %v747 = vsel %vm746, %v743, %v745
        %v748 = vsel %vm746, %v741, %v743
        %v749 = vsel %vm746, %v739, %v741
        %v750 = vsel %vm746, %v745, %v739
        %v751 = vlaneseq
        %v752 = vshrl.u32 %v751, 7
        %v753 = vsub.s32 7, %v752
        %v754 = vrot.slane %v530, %v753
        %v755 = vlaneseq
        %v756 = vshrl.u32 %v755, 7
        %v757 = vsub.s32 7, %v756
        %v758 = vrot.slane %v531, %v757
        %v759 = vlaneseq
        %v760 = vshrl.u32 %v759, 7
        %v761 = vsub.s32 7, %v760
        %v762 = vrot.slane %v532, %v761
        %v763 = vlaneseq
        %v764 = vshrl.u32 %v763, 7
        %v765 = vsub.s32 7, %v764
        %v766 = vrot.slane %v533, %v765
        %v767 = vmul.f32 %v749, %v754
        %v768 = vmul.f32 %v748, %v758
        %v769 = vmul.f32 %v747, %v762
        %v770 = vmul.f32 %v750, %v766
        %771 = vrot.lane.b32.xlu0 %v526, 111
        %v772 = vpop.permute.xlu0 %771
        %773 = vrot.lane.b32.xlu0 %v527, 111
        %v774 = vpop.permute.xlu0 %773
        %775 = vrot.lane.b32.xlu0 %v528, 111
        %v776 = vpop.permute.xlu0 %775
        %777 = vrot.lane.b32.xlu0 %v529, 111
        %v778 = vpop.permute.xlu0 %777
        %vm779 = vcmp.lt.s32.totalorder %v547, 111
        %v780 = vsel %vm779, %v776, %v778
        %v781 = vsel %vm779, %v774, %v776
        %v782 = vsel %vm779, %v772, %v774
        %v783 = vsel %vm779, %v778, %v772
        %v784 = vlaneseq
        %v785 = vshrl.u32 %v784, 7
        %v786 = vsub.s32 0, %v785
        %v787 = vrot.slane %v534, %v786
        %v788 = vlaneseq
        %v789 = vshrl.u32 %v788, 7
        %v790 = vsub.s32 0, %v789
        %v791 = vrot.slane %v535, %v790
        %v792 = vlaneseq
        %v793 = vshrl.u32 %v792, 7
        %v794 = vsub.s32 0, %v793
        %v795 = vrot.slane %v536, %v794
        %v796 = vlaneseq
        %v797 = vshrl.u32 %v796, 7
        %v798 = vsub.s32 0, %v797
        %v799 = vrot.slane %v537, %v798
        %v800 = vmul.f32 %v782, %v787
        %v801 = vmul.f32 %v781, %v791
        %v802 = vmul.f32 %v780, %v795
        %v803 = vmul.f32 %v783, %v799
        %v804 = vpack.c.bf16 %v602, %v569
        %v805 = vpack.c.bf16 %v603, %v570
        %v806 = vpack.c.bf16 %v604, %v571
        %v807 = vpack.c.bf16 %v605, %v572
        %v808 = vpack.c.bf16 %v668, %v635
        %v809 = vpack.c.bf16 %v669, %v636
        %v810 = vpack.c.bf16 %v670, %v637
        %v811 = vpack.c.bf16 %v671, %v638
        %v812 = vpack.c.bf16 %v701, %v526
        %v813 = vpack.c.bf16 %v702, %v527
        %v814 = vpack.c.bf16 %v703, %v528
        %v815 = vpack.c.bf16 %v704, %v529
        %v816 = vpack.c.bf16 %v767, %v734
        %v817 = vpack.c.bf16 %v768, %v735
        %v818 = vpack.c.bf16 %v769, %v736
        %v819 = vpack.c.bf16 %v770, %v737
        %v820 = vpack.c.bf16 %v800, %v800
        %v821 = vpack.c.bf16 %v801, %v801
        %v822 = vpack.c.bf16 %v802, %v802
        %v823 = vpack.c.bf16 %v803, %v803
        %v824 = vld [vmem:[%s3] sm:$0xf]
        %v825 = vld [vmem:[%s4] sm:$0xff]
        %827 = vset.pattern.permute.xlu0 0
        %828 = vperm.xlu0 %827, %v825
        %v829 = vpop.permute.xlu0 %828
        %vm831 = vcmask 588800
        %v833 = vsel %vm831, %v824, 0
        %vm835 = vcmask 1043456
        %v837 = vsel %vm835, %v820, 0
        %v840 = vsel %vm835, %v821, 0
        %v843 = vsel %vm835, %v822, 0
        %v846 = vsel %vm835, %v823, 0
        %848 = vmatprep.subr.bf16.mxu0 0
        %849 = vmatpush1.bf16.msra.mxu0 0
        %850 = vmatprep.subr.bf16.mxu0 0
        %851 = vmatpush1.bf16.msra.mxu0 0
        %852 = vmatprep.subr.bf16.mxu0 0
        %853 = vmatpush1.bf16.msra.mxu0 0
        %854 = vmatprep.subr.bf16.mxu0 %v840
        %855 = vmatpush1.bf16.msra.mxu0 %v837
        %856 = vmatprep.subr.bf16.mxu0 %v817
        %857 = vmatpush1.bf16.msra.mxu0 %v816
        %858 = vmatprep.subr.bf16.mxu0 %v813
        %859 = vmatpush1.bf16.msra.mxu0 %v812
        %860 = vmatprep.subr.bf16.mxu0 %v809
        %861 = vmatpush1.bf16.msra.mxu0 %v808
        %862 = vmatprep.subr.bf16.mxu0 %v805
        %863 = vmatpush1.bf16.msra.mxu0 %v804
        %864 = vmatprep.subr.bf16.mxu0 0
        %865 = vmatpush2.bf16.msra.mxu0 0
        %866 = vmatprep.subr.bf16.mxu0 0
        %867 = vmatpush2.bf16.msra.mxu0 0
        %868 = vmatprep.subr.bf16.mxu0 0
        %869 = vmatpush2.bf16.msra.mxu0 0
        %870 = vmatprep.subr.bf16.mxu0 0
        %871 = vmatpush2.bf16.msra.mxu0 0
        %872 = vmatprep.subr.bf16.mxu0 0
        %873 = vmatpush2.bf16.msra.mxu0 0
        %874 = vmatprep.subr.bf16.mxu0 0
        %875 = vmatpush2.bf16.msra.mxu0 0
        %876 = vmatprep.subr.bf16.mxu0 0
        %877 = vmatpush2.bf16.msra.mxu0 0
        %878 = vmatprep.subr.bf16.mxu0 0
        %879 = vmatpush2.bf16.msra.mxu0 0
        %880 = vmatprep.mubr.bf16.mxu0 0
        %881 = vmatmul.mubr.bf16.gmra.mxu0 %v833
        %v882 = vpop.f32.mrf.mxu0
        %v883 = vadd.f32 %v829, %v882
        %v884 = vpop.f32.mrf.mxu0
        %v885 = vadd.f32 %v829, %v884
        %v886 = vpop.f32.mrf.mxu0
        %v887 = vpop.f32.mrf.mxu0
        %888 = vdwg.mxu0
        %889 = vmatprep.subr.bf16.mxu0 0
        %890 = vmatpush1.bf16.msra.mxu0 0
        %891 = vmatprep.subr.bf16.mxu0 0
        %892 = vmatpush1.bf16.msra.mxu0 0
        %893 = vmatprep.subr.bf16.mxu0 0
        %894 = vmatpush1.bf16.msra.mxu0 0
        %895 = vmatprep.subr.bf16.mxu0 %v846
        %896 = vmatpush1.bf16.msra.mxu0 %v843
        %897 = vmatprep.subr.bf16.mxu0 %v819
        %898 = vmatpush1.bf16.msra.mxu0 %v818
        %899 = vmatprep.subr.bf16.mxu0 %v815
        %900 = vmatpush1.bf16.msra.mxu0 %v814
        %901 = vmatprep.subr.bf16.mxu0 %v811
        %902 = vmatpush1.bf16.msra.mxu0 %v810
        %903 = vmatprep.subr.bf16.mxu0 %v807
        %904 = vmatpush1.bf16.msra.mxu0 %v806
        %905 = vmatprep.subr.bf16.mxu0 0
        %906 = vmatpush2.bf16.msra.mxu0 0
        %907 = vmatprep.subr.bf16.mxu0 0
        %908 = vmatpush2.bf16.msra.mxu0 0
        %909 = vmatprep.subr.bf16.mxu0 0
        %910 = vmatpush2.bf16.msra.mxu0 0
        %911 = vmatprep.subr.bf16.mxu0 0
        %912 = vmatpush2.bf16.msra.mxu0 0
        %913 = vmatprep.subr.bf16.mxu0 0
        %914 = vmatpush2.bf16.msra.mxu0 0
        %915 = vmatprep.subr.bf16.mxu0 0
        %916 = vmatpush2.bf16.msra.mxu0 0
        %917 = vmatprep.subr.bf16.mxu0 0
        %918 = vmatpush2.bf16.msra.mxu0 0
        %919 = vmatprep.subr.bf16.mxu0 0
        %920 = vmatpush2.bf16.msra.mxu0 0
        %921 = vmatprep.mubr.bf16.mxu0 0
        %922 = vmatmul.mubr.bf16.gmra.mxu0 %v833
        %v923 = vpop.f32.mrf.mxu0
        %v924 = vadd.f32 %v829, %v923
        %v925 = vpop.f32.mrf.mxu0
        %v926 = vadd.f32 %v829, %v925
        %v927 = vpop.f32.mrf.mxu0
        %v928 = vpop.f32.mrf.mxu0
        %929 = vdwg.mxu0
        %v930 = vsub.f32 0.0, %v883
        %v931 = vsub.f32 0.0, %v885
        %v932 = vsub.f32 0.0, %v924
        %v933 = vsub.f32 0.0, %v926
        %v934 = vmul.f32 %v930, 1.442695
        %v935 = vpow.pop %v934
        %v936 = vmul.f32 %v931, 1.442695
        %v937 = vpow.pop %v936
        %v938 = vmul.f32 %v932, 1.442695
        %v939 = vpow.pop %v938
        %v940 = vmul.f32 %v933, 1.442695
        %v941 = vpow.pop %v940
        %v942 = vadd.f32 %v935, 1.0
        %v943 = vadd.f32 %v937, 1.0
        %v944 = vadd.f32 %v939, 1.0
        %v945 = vadd.f32 %v941, 1.0
        %v946 = vrcp.pop %v942
        %v947 = vmul.f32 1.0, %v946
        %v948 = vrcp.pop %v943
        %v949 = vmul.f32 1.0, %v948
        %v950 = vrcp.pop %v944
        %v951 = vmul.f32 1.0, %v950
        %v952 = vrcp.pop %v945
        %v953 = vmul.f32 1.0, %v952
        %v954 = vmul.f32 %v883, %v947
        %v955 = vmul.f32 %v885, %v949
        %v956 = vmul.f32 %v924, %v951
        %v957 = vmul.f32 %v926, %v953
        %v962 = vrot.slane %v954, 7
        %v963 = vrot.slane %v955, 7
        %v964 = vrot.slane %v956, 7
        %v965 = vrot.slane %v957, 7
        %vm970 = vcmask 1040384
        %v971 = vsel %vm970, %v445, %v962
        %v972 = vsel %vm970, %v447, %v963
        %v973 = vsel %vm970, %v488, %v964
        %v974 = vsel %vm970, %v490, %v965
        %975 = vst [vmem:[%s295] sm:$0xff] %v971
        %976 = vst [vmem:[%s295 + $0x8] sm:$0xff] %v972
        %977 = vst [vmem:[%s295 + $0x10] sm:$0xff] %v973
        %978 = vst [vmem:[%s295 + $0x18] sm:$0xff] %v974
        %979 = vst [vmem:[%s295 + $0x20] sm:$0x1] %v962
        %980 = vst [vmem:[%s295 + $0x28] sm:$0x1] %v963
        %981 = vst [vmem:[%s295 + $0x30] sm:$0x1] %v964
        %982 = vst [vmem:[%s295 + $0x38] sm:$0x1] %v965
        %s983 = sand.u32 %s156, 1
        %s984 = sand.u32 %s156, 1
        %s985 = smul.addr %s984, 64
        %s986 = scalar_lea.vmem [#allocation3], %s985
        // Predicated region
        $region68: #{_lambda_.1} parent=62 // pred_check
          %p987 = pneg %p166
        $region69: #{_lambda_.1} parent=62 // pred_check_branch
          %989 = sbr.rel (%p987) target = $region71
        $region70: #{_lambda_.1} parent=62 // pred_region
          %s990 = smul.u32 4, %s17
          %s991 = smul.addr %s990, 8
          %s992 = scalar_lea.vmem %s6, %s991
          // Predicated region
          $region72: #{_lambda_.1} parent=70 // pred_check
            _
          $region73: #{_lambda_.1} parent=70 // pred_check_branch
            %994 = sbr.rel (0) target = $region75
          $region74: #{_lambda_.1} parent=70 // pred_region
            // Predicated region
            $region76: #{_lambda_.1} parent=74 // pred_check
              _
            $region77: #{_lambda_.1} parent=74 // pred_check_branch
              %996 = sbr.rel (0) target = $region79
            $region78: #{_lambda_.1} parent=74 // pred_region
              loop: start=0, step=1, limit=1
              $region80: #{_lambda_.1} parent=78 // loop_pre_header
                _
              $region81: #{_lambda_.1} parent=78 // loop_header
                %s998 = sphi 0, %s1002
                %p999 = scmp.ge.s32.totalorder %s998, 1
                %s1003 = sphi %s986, %s986
                %s1004 = sphi %s992, %s992
              $region82: #{_lambda_.1} parent=78 // loop_header_branch
                %1001 = sbr.rel (%p999) target = $region86
              $region83: #{_lambda_.1} parent=78 // loop_body
                %v1005 = vld [vmem:[%s1003] sm:$0xff]
                %1006 = vst [vmem:[%s1004] sm:$0xff] %v1005
                %v1007 = vld [vmem:[%s1003 + $0x8] sm:$0xff]
                %1008 = vst [vmem:[%s1004 + $0x8] sm:$0xff] %v1007
                %v1009 = vld [vmem:[%s1003 + $0x10] sm:$0xff]
                %1010 = vst [vmem:[%s1004 + $0x10] sm:$0xff] %v1009
                %v1011 = vld [vmem:[%s1003 + $0x18] sm:$0xff]
                %1012 = vst [vmem:[%s1004 + $0x18] sm:$0xff] %v1011
                %v1013 = vld [vmem:[%s1003 + $0x20] sm:$0xff]
                %1014 = vst [vmem:[%s1004 + $0x40] sm:$0xff] %v1013
                %v1015 = vld [vmem:[%s1003 + $0x28] sm:$0xff]
                %1016 = vst [vmem:[%s1004 + $0x48] sm:$0xff] %v1015
                %v1017 = vld [vmem:[%s1003 + $0x30] sm:$0xff]
                %1018 = vst [vmem:[%s1004 + $0x50] sm:$0xff] %v1017
                %v1019 = vld [vmem:[%s1003 + $0x38] sm:$0xff]
                %1020 = vst [vmem:[%s1004 + $0x58] sm:$0xff] %v1019
              $region84: #{_lambda_.1} parent=78 // loop_footer
                %s1002 = sadd.s32 1, %s998
              $region85: #{_lambda_.1} parent=78 // loop_footer_branch
                %997 = sbr.rel target = $region81
              $region86: #{_lambda_.1} parent=78 // loop_exit
                _
            $region79: #{_lambda_.1} parent=74 // pred_fallthru
              _
            // Predicated region
            $region87: #{_lambda_.1} parent=74 // pred_check
              _
            $region88: #{_lambda_.1} parent=74 // pred_check_branch
              %1022 = sbr.rel target = $region90
            $region89: #{_lambda_.1} parent=74 // pred_region
              _
            $region90: #{_lambda_.1} parent=74 // pred_fallthru
              _
          $region75: #{_lambda_.1} parent=70 // pred_fallthru
            _
          %1023 = vnop
        $region71: #{_lambda_.1} parent=62 // pred_fallthru
          _
      $region63: #{_lambda_.1} parent=5 // pred_fallthru
        _
      %p1024 = scmp.le.s32.totalorder 2, %s12
      // Predicated region
      $region91: #{_lambda_.1} parent=5 // pred_check
        %p1025 = pneg %p1024
      $region92: #{_lambda_.1} parent=5 // pred_check_branch
        %1027 = sbr.rel (%p1025) target = $region94
      $region93: #{_lambda_.1} parent=5 // pred_region
        %s1028 = ssub.s32 %s12, 2
        // Predicated region
        $region95: #{_lambda_.1} parent=93 // pred_check
          %p1029 = pneg %p172
        $region96: #{_lambda_.1} parent=93 // pred_check_branch
          %1031 = sbr.rel (%p1029) target = $region98
        $region97: #{_lambda_.1} parent=93 // pred_region
          %s1032 = sand.u32 %s157, 1
          %s1033 = sand.u32 %s157, 1
          %s1034 = smul.addr %s1033, 64
          %s1035 = scalar_lea.vmem [#allocation3], %s1034
        $region98: #{_lambda_.1} parent=93 // pred_fallthru
          _
      $region94: #{_lambda_.1} parent=5 // pred_fallthru
        _
    $region6: #{_lambda_.1} parent=1 // loop_footer
      %s16 = sadd.s32 1, %s12
    $region7: #{_lambda_.1} parent=1 // loop_footer_branch
      %11 = sbr.rel target = $region3
    $region8: #{_lambda_.1} parent=1 // loop_exit
      _

</llo_original>
